<compile_context>
chip_gen: v7x
topology: tpu7x:2x2x1
jax: 0.10.0
libtpu: 0.0.40
codegen_flags: <defaults>
</compile_context>

<pallas_src>
import functools

import jax
import jax.numpy as jnp
import numpy as np
from jax.experimental import pallas as pl
from jax.experimental.pallas import tpu as pltpu

# ---- module hyperparameters (attention_block.py) ----------------------------
N_EMBD = 128
NUM_HEADS = 4
HEAD_SIZE = 32          # num_heads * head_size == n_embd
SEQ_LEN = 8             # T (<= block_size = 256)
BATCH = 2

_NEG_INF = -1e30


def _mha_kernel(x_ref, w_ref, hmask_ref, bias_ref, ones_ref, bp_ref, o_ref,
                *, num_heads, head_size, n_embd):
    """Whole (B*T, E) problem in one grid step (everything in vregs/VMEM).

    x_ref    : (R, E)               flattened input, R = B*T
    w_ref    : (E, 2*H*hs + H*E)    [scaled Wq | Wk | Wv_h @ Wp_h per head]
    hmask_ref: (H*R, H*hs)          1.0 on head h's lanes for rows [h*R, (h+1)*R)
    bias_ref : (R, H*R)             0 / -1e30 additive mask (kills cross-batch pairs)
    ones_ref : (H*R, H*R)           block-diagonal ones (per-head softmax denominators)
    bp_ref   : (1, E)               projection bias
    o_ref    : (R, E)
    """
    H, hs, E = num_heads, head_size, n_embd
    nq = H * hs

    x = x_ref[...]
    w = w_ref[...]

    # 1. One lane-dense MXU push: pre-scaled Q, K, and the projection-folded values.
    fused = jnp.dot(x, w, preferred_element_type=jnp.float32)        # (R, 2*nq + H*E)
    q = fused[:, :nq]                                                # (R, 128)
    k = fused[:, nq:2 * nq]                                          # (R, 128)

    # 2. Head-stacked, lane-masked keys: row h*R + s holds K[s] on head h's lanes only.
    k_stack = jnp.concatenate([k] * H, axis=0) * hmask_ref[...]      # (H*R, 128)

    # 3. Every (batch, head) score block from a single push, contracting all 128 lanes.
    #    dot_general contracts the last dims -> no materialized k^T / XLU transpose.
    s = jax.lax.dot_general(q, k_stack, (((1,), (1,)), ((), ())),
                            preferred_element_type=jnp.float32)      # (R, H*R)
    s = s + bias_ref[...]                                            # cross-batch -> -1e30

    # 4. Per-head softmax. Subtracting the (single) global row max keeps each head's
    #    softmax exact (same shift across a segment) and is overflow-safe; per-head
    #    denominators are broadcast back with a block-diagonal-ones matmul.
    m = jnp.max(s, axis=-1, keepdims=True)
    p = jnp.exp(s - m)                                               # masked entries -> 0
    denom = jnp.dot(p, ones_ref[...], preferred_element_type=jnp.float32)
    p = p / denom                                                    # exact divide (tiny)

    # 5. Head-stacked projected values (128-lane-aligned slices only):
    #    row h*R + s  =  x[s] @ (Wv_h @ Wp_h).
    vp_stack = jnp.concatenate(
        [fused[:, 2 * nq + h * E: 2 * nq + (h + 1) * E] for h in range(H)], axis=0)

    # 6. Attention + folded output projection in one push; single lane-dense store.
    out = jnp.dot(p, vp_stack, preferred_element_type=jnp.float32) + bp_ref[...]
    o_ref[...] = out.astype(o_ref.dtype)


def prepare_params(wq, wk, wv, wp, bp, *, batch, seq_len):
    """One-time parameter / constant preparation (hoisted out of the forward call).

    wq/wk/wv : (H, E, hs)  per-head weights, pre-transposed so y = x @ W
    wp       : (H*hs, E)   projection weight, pre-transposed so y = cat @ W
    bp       : (E,)        projection bias
    """
    H, E, hs = wq.shape
    R = batch * seq_len
    scale = float(hs) ** -0.5

    wq_all = jnp.transpose(wq, (1, 0, 2)).reshape(E, H * hs) * scale      # scale folded into Q
    wk_all = jnp.transpose(wk, (1, 0, 2)).reshape(E, H * hs)
    # Fold the output projection into the value path: Wvp_h = Wv_h @ Wp_h  (E, E).
    wvp_all = jnp.concatenate(
        [jnp.matmul(wv[h], wp[h * hs:(h + 1) * hs, :],
                    precision=jax.lax.Precision.HIGHEST) for h in range(H)], axis=-1)
    w_fused = jnp.concatenate([wq_all, wk_all, wvp_all], axis=-1)         # (E, 2*H*hs + H*E)

    rows = np.arange(H * R)
    # head-h lane mask for the stacked keys
    hmask = (np.arange(H * hs)[None, :] // hs == rows[:, None] // R).astype(np.float32)
    # additive mask: query row r may only attend to keys from the same batch
    q_batch = np.arange(R) // seq_len
    k_batch = (rows % R) // seq_len
    bias = np.where(q_batch[:, None] == k_batch[None, :], 0.0, _NEG_INF).astype(np.float32)
    # block-diagonal ones: broadcasts each head's softmax denominator across its columns
    ones_bd = (rows[:, None] // R == rows[None, :] // R).astype(np.float32)

    return dict(
        w_fused=w_fused,
        hmask=jnp.asarray(hmask),
        bias=jnp.asarray(bias),
        ones_bd=jnp.asarray(ones_bd),
        bp=jnp.asarray(bp).reshape(1, E),
    )


@jax.jit
def mha_forward(x, params):
    """Per-call wrapper: just a reshape + one pallas_call (all prep lives in prepare_params)."""
    B, T, E = x.shape
    R = B * T
    H = params["hmask"].shape[0] // R
    hs = params["hmask"].shape[1] // H
    W = params["w_fused"].shape[1]

    kernel = functools.partial(_mha_kernel, num_heads=H, head_size=hs, n_embd=E)

    flops = 2 * R * (E * W + E * (H * R) + (H * R) * (H * R) + (H * R) * E)
    bytes_accessed = 4 * (2 * R * E + E * W + (H * R) * (H * hs) + R * (H * R)
                          + (H * R) * (H * R) + E)

    out = pl.pallas_call(
        kernel,
        out_shape=jax.ShapeDtypeStruct((R, E), x.dtype),
        grid=(1,),                                               # single step, launch-bound
        in_specs=[
            pl.BlockSpec((R, E), lambda i: (0, 0)),              # x (flattened)
            pl.BlockSpec((E, W), lambda i: (0, 0)),              # fused weights
            pl.BlockSpec((H * R, H * hs), lambda i: (0, 0)),     # head lane mask
            pl.BlockSpec((R, H * R), lambda i: (0, 0)),          # cross-batch bias
            pl.BlockSpec((H * R, H * R), lambda i: (0, 0)),      # block-diag ones
            pl.BlockSpec((1, E), lambda i: (0, 0)),              # projection bias
        ],
        out_specs=pl.BlockSpec((R, E), lambda i: (0, 0)),
        compiler_params=pltpu.CompilerParams(dimension_semantics=("arbitrary",)),
        cost_estimate=pl.CostEstimate(flops=flops, transcendentals=R * H * R,
                                      bytes_accessed=bytes_accessed),
    )(x.reshape(R, E), params["w_fused"], params["hmask"], params["bias"],
      params["ones_bd"], params["bp"])
    return out.reshape(B, T, E)


def _reference(x, wq, wk, wv, wp, bp):
    """Pure-JAX reference mirroring the PyTorch forward (eval mode, no causal mask)."""
    outs = []
    for h in range(wq.shape[0]):
        q = x @ wq[h]
        k = x @ wk[h]
        v = x @ wv[h]
        wei = (q @ jnp.swapaxes(k, -1, -2)) * (k.shape[-1] ** -0.5)
        wei = jax.nn.softmax(wei, axis=-1)
        outs.append(wei @ v)
    cat = jnp.concatenate(outs, axis=-1)
    return cat @ wp + bp


if __name__ == "__main__":
    key = jax.random.PRNGKey(0)
    kx, kq, kk, kv, kp, kb = jax.random.split(key, 6)

    x = jax.random.normal(kx, (BATCH, SEQ_LEN, N_EMBD), dtype=jnp.float32)

    # Synthetic parameters (shapes match nn.Linear weights, stored pre-transposed
    # so the math is y = x @ W).
    wq = 0.05 * jax.random.normal(kq, (NUM_HEADS, N_EMBD, HEAD_SIZE), dtype=jnp.float32)
    wk = 0.05 * jax.random.normal(kk, (NUM_HEADS, N_EMBD, HEAD_SIZE), dtype=jnp.float32)
    wv = 0.05 * jax.random.normal(kv, (NUM_HEADS, N_EMBD, HEAD_SIZE), dtype=jnp.float32)
    wp = 0.05 * jax.random.normal(kp, (NUM_HEADS * HEAD_SIZE, N_EMBD), dtype=jnp.float32)
    bp = 0.05 * jax.random.normal(kb, (N_EMBD,), dtype=jnp.float32)

    # One-time setup (weight fusion, projection fold, masks) — hoisted per review.
    params = prepare_params(wq, wk, wv, wp, bp, batch=BATCH, seq_len=SEQ_LEN)

    out = mha_forward(x, params)
    out = jax.block_until_ready(out)

    ref = _reference(x, wq, wk, wv, wp, bp)
    assert out.shape == (BATCH, SEQ_LEN, N_EMBD)
    # f32 throughout; tolerance covers MXU f32-pass rounding and the Wv@Wp refactor.
    assert jnp.allclose(out, ref, atol=1e-3, rtol=1e-3), "mismatch vs reference"

    print("KERNEL_OK")
</pallas_src>

<mosaic_0001>
module attributes {stable_mosaic.version = 11 : i64} {
  func.func @_mha_kernel(%arg0: i32, %arg1: memref<16x128xf32, #tpu.memory_space<vmem>>, %arg2: memref<128x768xf32, #tpu.memory_space<vmem>>, %arg3: memref<64x128xf32, #tpu.memory_space<vmem>>, %arg4: memref<16x64xf32, #tpu.memory_space<vmem>>, %arg5: memref<64x64xf32, #tpu.memory_space<vmem>>, %arg6: memref<1x128xf32, #tpu.memory_space<vmem>>, %arg7: memref<16x128xf32, #tpu.memory_space<vmem>>) attributes {dimension_semantics = [#tpu.dimension_semantics<arbitrary>], iteration_bounds = array<i64: 1>, scalar_prefetch = 0 : i64, scratch_operands = 0 : i64, tpu.core_type = #tpu.core_type<tc>, window_params = [{pipeline_mode = #tpu.pipeline_mode<synchronous>, transform_indices = @transform_0, window_bounds = array<i64: 16, 128>}, {pipeline_mode = #tpu.pipeline_mode<synchronous>, transform_indices = @transform_1, window_bounds = array<i64: 128, 768>}, {pipeline_mode = #tpu.pipeline_mode<synchronous>, transform_indices = @transform_2, window_bounds = array<i64: 64, 128>}, {pipeline_mode = #tpu.pipeline_mode<synchronous>, transform_indices = @transform_3, window_bounds = array<i64: 16, 64>}, {pipeline_mode = #tpu.pipeline_mode<synchronous>, transform_indices = @transform_4, window_bounds = array<i64: 64, 64>}, {pipeline_mode = #tpu.pipeline_mode<synchronous>, transform_indices = @transform_5, window_bounds = array<i64: 1, 128>}, {pipeline_mode = #tpu.pipeline_mode<synchronous>, transform_indices = @transform_6, window_bounds = array<i64: 16, 128>}]} {
    %c0 = arith.constant 0 : index
    %c0_0 = arith.constant 0 : index
    %0 = vector.load %arg1[%c0, %c0_0] : memref<16x128xf32, #tpu.memory_space<vmem>>, vector<16x128xf32>
    %c0_1 = arith.constant 0 : index
    %c0_2 = arith.constant 0 : index
    %1 = vector.load %arg2[%c0_1, %c0_2] : memref<128x768xf32, #tpu.memory_space<vmem>>, vector<128x768xf32>
    %cst = arith.constant dense<0.000000e+00> : vector<16x768xf32>
    %2 = tpu.matmul %0, %1, %cst {dimension_numbers = #tpu.dot_dimension_numbers<[1], [0], [0], [1], [0, 0, 1, 1], [], []>} : vector<16x128xf32>, vector<128x768xf32>, vector<16x768xf32> -> vector<16x768xf32>
    %3 = vector.extract_strided_slice %2 {offsets = [0, 0], sizes = [16, 128], strides = [1, 1]} : vector<16x768xf32> to vector<16x128xf32>
    %4 = vector.extract_strided_slice %2 {offsets = [0, 128], sizes = [16, 128], strides = [1, 1]} : vector<16x768xf32> to vector<16x128xf32>
    %5 = tpu.concatenate %4, %4, %4, %4 in 0 : vector<16x128xf32>, vector<16x128xf32>, vector<16x128xf32>, vector<16x128xf32> -> vector<64x128xf32>
    %c0_3 = arith.constant 0 : index
    %c0_4 = arith.constant 0 : index
    %6 = vector.load %arg3[%c0_3, %c0_4] : memref<64x128xf32, #tpu.memory_space<vmem>>, vector<64x128xf32>
    %7 = arith.mulf %5, %6 : vector<64x128xf32>
    %cst_5 = arith.constant dense<0.000000e+00> : vector<16x64xf32>
    %8 = tpu.matmul %3, %7, %cst_5 {dimension_numbers = #tpu.dot_dimension_numbers<[1], [1], [0], [0], [0, 0, 1, 0], [], []>} : vector<16x128xf32>, vector<64x128xf32>, vector<16x64xf32> -> vector<16x64xf32>
    %c0_6 = arith.constant 0 : index
    %c0_7 = arith.constant 0 : index
    %9 = vector.load %arg4[%c0_6, %c0_7] : memref<16x64xf32, #tpu.memory_space<vmem>>, vector<16x64xf32>
    %10 = arith.addf %8, %9 : vector<16x64xf32>
    %cst_8 = arith.constant dense<0xFF800000> : vector<16xf32>
    %11 = vector.multi_reduction <maximumf>, %10, %cst_8 [1] : vector<16x64xf32> to vector<16xf32>
    %12 = vector.shape_cast %11 : vector<16xf32> to vector<16x1xf32>
    %13 = vector.broadcast %12 : vector<16x1xf32> to vector<16x64xf32>
    %14 = arith.subf %10, %13 : vector<16x64xf32>
    %15 = math.exp %14 : vector<16x64xf32>
    %c0_9 = arith.constant 0 : index
    %c0_10 = arith.constant 0 : index
    %16 = vector.load %arg5[%c0_9, %c0_10] : memref<64x64xf32, #tpu.memory_space<vmem>>, vector<64x64xf32>
    %cst_11 = arith.constant dense<0.000000e+00> : vector<16x64xf32>
    %17 = tpu.matmul %15, %16, %cst_11 {dimension_numbers = #tpu.dot_dimension_numbers<[1], [0], [0], [1], [0, 0, 1, 1], [], []>} : vector<16x64xf32>, vector<64x64xf32>, vector<16x64xf32> -> vector<16x64xf32>
    %18 = arith.divf %15, %17 : vector<16x64xf32>
    %19 = vector.extract_strided_slice %2 {offsets = [0, 256], sizes = [16, 128], strides = [1, 1]} : vector<16x768xf32> to vector<16x128xf32>
    %20 = vector.extract_strided_slice %2 {offsets = [0, 384], sizes = [16, 128], strides = [1, 1]} : vector<16x768xf32> to vector<16x128xf32>
    %21 = vector.extract_strided_slice %2 {offsets = [0, 512], sizes = [16, 128], strides = [1, 1]} : vector<16x768xf32> to vector<16x128xf32>
    %22 = vector.extract_strided_slice %2 {offsets = [0, 640], sizes = [16, 128], strides = [1, 1]} : vector<16x768xf32> to vector<16x128xf32>
    %23 = tpu.concatenate %19, %20, %21, %22 in 0 : vector<16x128xf32>, vector<16x128xf32>, vector<16x128xf32>, vector<16x128xf32> -> vector<64x128xf32>
    %cst_12 = arith.constant dense<0.000000e+00> : vector<16x128xf32>
    %24 = tpu.matmul %18, %23, %cst_12 {dimension_numbers = #tpu.dot_dimension_numbers<[1], [0], [0], [1], [0, 0, 1, 1], [], []>} : vector<16x64xf32>, vector<64x128xf32>, vector<16x128xf32> -> vector<16x128xf32>
    %c0_13 = arith.constant 0 : index
    %c0_14 = arith.constant 0 : index
    %25 = vector.load %arg6[%c0_13, %c0_14] : memref<1x128xf32, #tpu.memory_space<vmem>>, vector<1x128xf32>
    %26 = vector.broadcast %25 : vector<1x128xf32> to vector<16x128xf32>
    %27 = arith.addf %24, %26 : vector<16x128xf32>
    %c0_15 = arith.constant 0 : index
    %c0_16 = arith.constant 0 : index
    %28 = vector.load %arg7[%c0_15, %c0_16] : memref<16x128xf32, #tpu.memory_space<vmem>>, vector<16x128xf32>
    tpu.vector_store %arg7[%c0_15, %c0_16], %27 {strides = array<i32>} : memref<16x128xf32, #tpu.memory_space<vmem>>, vector<16x128xf32>,
    return
  }
  func.func @transform_0(%arg0: i32) -> (i32, i32) {
    %c0_i32 = arith.constant 0 : i32
    %c0_i32_0 = arith.constant 0 : i32
    %c0_i32_1 = arith.constant 0 : i32
    return %c0_i32, %c0_i32_0 : i32, i32
  }
  func.func @transform_1(%arg0: i32) -> (i32, i32) {
    %c0_i32 = arith.constant 0 : i32
    %c0_i32_0 = arith.constant 0 : i32
    %c0_i32_1 = arith.constant 0 : i32
    return %c0_i32, %c0_i32_0 : i32, i32
  }
  func.func @transform_2(%arg0: i32) -> (i32, i32) {
    %c0_i32 = arith.constant 0 : i32
    %c0_i32_0 = arith.constant 0 : i32
    %c0_i32_1 = arith.constant 0 : i32
    return %c0_i32, %c0_i32_0 : i32, i32
  }
  func.func @transform_3(%arg0: i32) -> (i32, i32) {
    %c0_i32 = arith.constant 0 : i32
    %c0_i32_0 = arith.constant 0 : i32
    %c0_i32_1 = arith.constant 0 : i32
    return %c0_i32, %c0_i32_0 : i32, i32
  }
  func.func @transform_4(%arg0: i32) -> (i32, i32) {
    %c0_i32 = arith.constant 0 : i32
    %c0_i32_0 = arith.constant 0 : i32
    %c0_i32_1 = arith.constant 0 : i32
    return %c0_i32, %c0_i32_0 : i32, i32
  }
  func.func @transform_5(%arg0: i32) -> (i32, i32) {
    %c0_i32 = arith.constant 0 : i32
    %c0_i32_0 = arith.constant 0 : i32
    %c0_i32_1 = arith.constant 0 : i32
    return %c0_i32, %c0_i32_0 : i32, i32
  }
  func.func @transform_6(%arg0: i32) -> (i32, i32) {
    %c0_i32 = arith.constant 0 : i32
    %c0_i32_0 = arith.constant 0 : i32
    %c0_i32_1 = arith.constant 0 : i32
    return %c0_i32, %c0_i32_0 : i32, i32
  }
}

</mosaic_0001>

<llo_original>
// kernel: mha_forward.1
$region0: #{mha_forward.1}
  #allocation0 [shape = 'u32[]', space=smem, size = 0x4, offset = 0x4, fixed_abs, tag = 'smem constant byte address 0x4 - core index']
  #allocation1 [shape = 'u32[144,128]{1,0:T(1,128)}', space=vmem, size = 0x12000, scoped, tag = 'internal scratch']
  %s0 = inlined_call_operand.hbm [shape: f32[16,128], index: 0, kind: input, shape index: {}]
  %s1 = inlined_call_operand.hbm [shape: f32[128,768], index: 1, kind: input, shape index: {}]
  %s2 = inlined_call_operand.hbm [shape: f32[64,128], index: 2, kind: input, shape index: {}]
  %s3 = inlined_call_operand.hbm [shape: f32[16,64], index: 3, kind: input, shape index: {}]
  %s4 = inlined_call_operand.hbm [shape: f32[64,64], index: 4, kind: input, shape index: {}]
  %s5 = inlined_call_operand.vmem [shape: f32[1,128], index: 5, kind: input, shape index: {}]
  %s6 = inlined_call_operand.hbm [shape: f32[16,128], index: 6, kind: output, shape index: {}]
  %s7 = sld [smem:[#allocation0]]
  $region54: #{mha_forward.1} parent=0
    _
  %s9 = ssub.s32 1, %s7
  %s10 = scalar_select 0, %s9, %s7
  $region1: #{mha_forward.1} parent=0
    #allocation2 [shape = 'u8[8192]{0}', space=vmem, size = 0x2000, scoped, tag = 'input window, operand 0, single buffered']
    #allocation3 [shape = 's32[1]{0}', space=sflag, size = 0x4, scoped, tag = 'scoped memory for mha_forward.1']
    #allocation4 [shape = 's32[1]{0}', space=sflag, size = 0x4, scoped, tag = 'scoped memory for mha_forward.1']
    #allocation5 [shape = 'u8[393216]{0}', space=vmem, size = 0x60000, scoped, tag = 'input window, operand 1, single buffered']
    #allocation6 [shape = 's32[1]{0}', space=sflag, size = 0x4, scoped, tag = 'scoped memory for mha_forward.1']
    #allocation7 [shape = 'u8[32768]{0}', space=vmem, size = 0x8000, scoped, tag = 'input window, operand 2, single buffered']
    #allocation8 [shape = 'u8[8192]{0}', space=vmem, size = 0x2000, scoped, tag = 'input window, operand 3, single buffered']
    #allocation9 [shape = 's32[1]{0}', space=sflag, size = 0x4, scoped, tag = 'scoped memory for mha_forward.1']
    #allocation10 [shape = 'u8[32768]{0}', space=vmem, size = 0x8000, scoped, tag = 'input window, operand 4, single buffered']
    #allocation11 [shape = 'u8[8192]{0}', space=vmem, size = 0x2000, scoped, tag = 'output window, operand 0, single buffered']
    %11 = vsyncpa [#allocation3], 0
    %12 = vsyncpa [#allocation6], 0
    %13 = vsyncpa [#allocation9], 0
    %14 = vsyncpa [#allocation4], 0
    // Predicated region
    $region2: #{mha_forward.1} parent=1 // pred_check
      _
    $region3: #{mha_forward.1} parent=1 // pred_check_branch
      %16 = sbr.rel (0) target = $region5
    $region4: #{mha_forward.1} parent=1 // pred_region
      %s18 = ssub.s32 256, 256
      %19 = vsyncadd [#allocation3], %s18
      %s20 = sshll.u32 [#allocation2], 4
      %s21 = int_to_ptr.vmem [resolvable:$true] %s20
      %26 = dma.hbm_to_vmem [thread:$0]  %s0, 256, %s21, [#allocation3], 128, 128, 8
    $region5: #{mha_forward.1} parent=1 // pred_fallthru
      _
    // Predicated region
    $region6: #{mha_forward.1} parent=1 // pred_check
      _
    $region7: #{mha_forward.1} parent=1 // pred_check_branch
      %28 = sbr.rel (0) target = $region9
    $region8: #{mha_forward.1} parent=1 // pred_region
      %s30 = ssub.s32 12288, 12288
      %31 = vsyncadd [#allocation6], %s30
      %s32 = sshll.u32 [#allocation5], 4
      %s33 = int_to_ptr.vmem [resolvable:$true] %s32
      %38 = dma.hbm_to_vmem [thread:$0]  %s1, 12288, %s33, [#allocation6], 768, 768, 48
    $region9: #{mha_forward.1} parent=1 // pred_fallthru
      _
    // Predicated region
    $region10: #{mha_forward.1} parent=1 // pred_check
      _
    $region11: #{mha_forward.1} parent=1 // pred_check_branch
      %40 = sbr.rel (0) target = $region13
    $region12: #{mha_forward.1} parent=1 // pred_region
      %s42 = ssub.s32 1024, 1024
      %43 = vsyncadd [#allocation6], %s42
      %s44 = sshll.u32 [#allocation7], 4
      %s45 = int_to_ptr.vmem [resolvable:$true] %s44
      %50 = dma.hbm_to_vmem [thread:$0]  %s2, 1024, %s45, [#allocation6], 128, 128, 8
    $region13: #{mha_forward.1} parent=1 // pred_fallthru
      _
    // Predicated region
    $region14: #{mha_forward.1} parent=1 // pred_check
      _
    $region15: #{mha_forward.1} parent=1 // pred_check_branch
      %52 = sbr.rel (0) target = $region17
    $region16: #{mha_forward.1} parent=1 // pred_region
      %s54 = ssub.s32 256, 256
      %55 = vsyncadd [#allocation9], %s54
      %s56 = sshll.u32 [#allocation8], 4
      %s57 = int_to_ptr.vmem [resolvable:$true] %s56
      %62 = dma.hbm_to_vmem [thread:$0]  %s3, 256, %s57, [#allocation9], 128, 128, 8
    $region17: #{mha_forward.1} parent=1 // pred_fallthru
      _
    // Predicated region
    $region18: #{mha_forward.1} parent=1 // pred_check
      _
    $region19: #{mha_forward.1} parent=1 // pred_check_branch
      %64 = sbr.rel (0) target = $region21
    $region20: #{mha_forward.1} parent=1 // pred_region
      %s66 = ssub.s32 1024, 1024
      %67 = vsyncadd [#allocation9], %s66
      %s68 = sshll.u32 [#allocation10], 4
      %s69 = int_to_ptr.vmem [resolvable:$true] %s68
      %74 = dma.hbm_to_vmem [thread:$0]  %s4, 1024, %s69, [#allocation9], 128, 128, 8
    $region21: #{mha_forward.1} parent=1 // pred_fallthru
      _
    // Predicated region
    $region22: #{mha_forward.1} parent=1 // pred_check
      _
    $region23: #{mha_forward.1} parent=1 // pred_check_branch
      %76 = sbr.rel (0) target = $region25
    $region24: #{mha_forward.1} parent=1 // pred_region
      _
    $region25: #{mha_forward.1} parent=1 // pred_fallthru
      _
    // Predicated region
    $region26: #{mha_forward.1} parent=1 // pred_check
      _
    $region27: #{mha_forward.1} parent=1 // pred_check_branch
      %78 = sbr.rel (0) target = $region29
    $region28: #{mha_forward.1} parent=1 // pred_region
      %79 = dma.done [#allocation3], 256
    $region29: #{mha_forward.1} parent=1 // pred_fallthru
      _
    // Predicated region
    $region30: #{mha_forward.1} parent=1 // pred_check
      _
    $region31: #{mha_forward.1} parent=1 // pred_check_branch
      %81 = sbr.rel (0) target = $region33
    $region32: #{mha_forward.1} parent=1 // pred_region
      %82 = dma.done [#allocation6], 12288
    $region33: #{mha_forward.1} parent=1 // pred_fallthru
      _
    // Predicated region
    $region34: #{mha_forward.1} parent=1 // pred_check
      _
    $region35: #{mha_forward.1} parent=1 // pred_check_branch
      %84 = sbr.rel (0) target = $region37
    $region36: #{mha_forward.1} parent=1 // pred_region
      %85 = dma.done [#allocation6], 1024
    $region37: #{mha_forward.1} parent=1 // pred_fallthru
      _
    // Predicated region
    $region38: #{mha_forward.1} parent=1 // pred_check
      _
    $region39: #{mha_forward.1} parent=1 // pred_check_branch
      %87 = sbr.rel (0) target = $region41
    $region40: #{mha_forward.1} parent=1 // pred_region
      %88 = dma.done [#allocation9], 256
    $region41: #{mha_forward.1} parent=1 // pred_fallthru
      _
    // Predicated region
    $region42: #{mha_forward.1} parent=1 // pred_check
      _
    $region43: #{mha_forward.1} parent=1 // pred_check_branch
      %90 = sbr.rel (0) target = $region45
    $region44: #{mha_forward.1} parent=1 // pred_region
      %91 = dma.done [#allocation9], 1024
    $region45: #{mha_forward.1} parent=1 // pred_fallthru
      _
    %v92 = vld [vmem:[#allocation2] sm:$0xff]
    %v93 = vld [vmem:[#allocation2 + $0x8] sm:$0xff]
    %v94 = vld [vmem:[#allocation5] sm:$0xff]
    %v95 = vld [vmem:[#allocation5 + $0x8] sm:$0xff]
    %v96 = vld [vmem:[#allocation5 + $0x10] sm:$0xff]
    %v97 = vld [vmem:[#allocation5 + $0x18] sm:$0xff]
    %v98 = vld [vmem:[#allocation5 + $0x20] sm:$0xff]
    %v99 = vld [vmem:[#allocation5 + $0x28] sm:$0xff]
    %v100 = vld [vmem:[#allocation5 + $0x30] sm:$0xff]
    %v101 = vld [vmem:[#allocation5 + $0x38] sm:$0xff]
    %v102 = vld [vmem:[#allocation5 + $0x40] sm:$0xff]
    %v103 = vld [vmem:[#allocation5 + $0x48] sm:$0xff]
    %v104 = vld [vmem:[#allocation5 + $0x50] sm:$0xff]
    %v105 = vld [vmem:[#allocation5 + $0x58] sm:$0xff]
    %v106 = vld [vmem:[#allocation5 + $0x60] sm:$0xff]
    %v107 = vld [vmem:[#allocation5 + $0x68] sm:$0xff]
    %v108 = vld [vmem:[#allocation5 + $0x70] sm:$0xff]
    %v109 = vld [vmem:[#allocation5 + $0x78] sm:$0xff]
    %v110 = vld [vmem:[#allocation5 + $0x80] sm:$0xff]
    %v111 = vld [vmem:[#allocation5 + $0x88] sm:$0xff]
    %v112 = vld [vmem:[#allocation5 + $0x90] sm:$0xff]
    %v113 = vld [vmem:[#allocation5 + $0x98] sm:$0xff]
    %v114 = vld [vmem:[#allocation5 + $0xa0] sm:$0xff]
    %v115 = vld [vmem:[#allocation5 + $0xa8] sm:$0xff]
    %v116 = vld [vmem:[#allocation5 + $0xb0] sm:$0xff]
    %v117 = vld [vmem:[#allocation5 + $0xb8] sm:$0xff]
    %v118 = vld [vmem:[#allocation5 + $0xc0] sm:$0xff]
    %v119 = vld [vmem:[#allocation5 + $0xc8] sm:$0xff]
    %v120 = vld [vmem:[#allocation5 + $0xd0] sm:$0xff]
    %v121 = vld [vmem:[#allocation5 + $0xd8] sm:$0xff]
    %v122 = vld [vmem:[#allocation5 + $0xe0] sm:$0xff]
    %v123 = vld [vmem:[#allocation5 + $0xe8] sm:$0xff]
    %v124 = vld [vmem:[#allocation5 + $0xf0] sm:$0xff]
    %v125 = vld [vmem:[#allocation5 + $0xf8] sm:$0xff]
    %v126 = vld [vmem:[#allocation5 + $0x100] sm:$0xff]
    %v127 = vld [vmem:[#allocation5 + $0x108] sm:$0xff]
    %v128 = vld [vmem:[#allocation5 + $0x110] sm:$0xff]
    %v129 = vld [vmem:[#allocation5 + $0x118] sm:$0xff]
    %v130 = vld [vmem:[#allocation5 + $0x120] sm:$0xff]
    %v131 = vld [vmem:[#allocation5 + $0x128] sm:$0xff]
    %v132 = vld [vmem:[#allocation5 + $0x130] sm:$0xff]
    %v133 = vld [vmem:[#allocation5 + $0x138] sm:$0xff]
    %v134 = vld [vmem:[#allocation5 + $0x140] sm:$0xff]
    %v135 = vld [vmem:[#allocation5 + $0x148] sm:$0xff]
    %v136 = vld [vmem:[#allocation5 + $0x150] sm:$0xff]
    %v137 = vld [vmem:[#allocation5 + $0x158] sm:$0xff]
    %v138 = vld [vmem:[#allocation5 + $0x160] sm:$0xff]
    %v139 = vld [vmem:[#allocation5 + $0x168] sm:$0xff]
    %v140 = vld [vmem:[#allocation5 + $0x170] sm:$0xff]
    %v141 = vld [vmem:[#allocation5 + $0x178] sm:$0xff]
    %v142 = vld [vmem:[#allocation5 + $0x180] sm:$0xff]
    %v143 = vld [vmem:[#allocation5 + $0x188] sm:$0xff]
    %v144 = vld [vmem:[#allocation5 + $0x190] sm:$0xff]
    %v145 = vld [vmem:[#allocation5 + $0x198] sm:$0xff]
    %v146 = vld [vmem:[#allocation5 + $0x1a0] sm:$0xff]
    %v147 = vld [vmem:[#allocation5 + $0x1a8] sm:$0xff]
    %v148 = vld [vmem:[#allocation5 + $0x1b0] sm:$0xff]
    %v149 = vld [vmem:[#allocation5 + $0x1b8] sm:$0xff]
    %v150 = vld [vmem:[#allocation5 + $0x1c0] sm:$0xff]
    %v151 = vld [vmem:[#allocation5 + $0x1c8] sm:$0xff]
    %v152 = vld [vmem:[#allocation5 + $0x1d0] sm:$0xff]
    %v153 = vld [vmem:[#allocation5 + $0x1d8] sm:$0xff]
    %v154 = vld [vmem:[#allocation5 + $0x1e0] sm:$0xff]
    %v155 = vld [vmem:[#allocation5 + $0x1e8] sm:$0xff]
    %v156 = vld [vmem:[#allocation5 + $0x1f0] sm:$0xff]
    %v157 = vld [vmem:[#allocation5 + $0x1f8] sm:$0xff]
    %v158 = vld [vmem:[#allocation5 + $0x200] sm:$0xff]
    %v159 = vld [vmem:[#allocation5 + $0x208] sm:$0xff]
    %v160 = vld [vmem:[#allocation5 + $0x210] sm:$0xff]
    %v161 = vld [vmem:[#allocation5 + $0x218] sm:$0xff]
    %v162 = vld [vmem:[#allocation5 + $0x220] sm:$0xff]
    %v163 = vld [vmem:[#allocation5 + $0x228] sm:$0xff]
    %v164 = vld [vmem:[#allocation5 + $0x230] sm:$0xff]
    %v165 = vld [vmem:[#allocation5 + $0x238] sm:$0xff]
    %v166 = vld [vmem:[#allocation5 + $0x240] sm:$0xff]
    %v167 = vld [vmem:[#allocation5 + $0x248] sm:$0xff]
    %v168 = vld [vmem:[#allocation5 + $0x250] sm:$0xff]
    %v169 = vld [vmem:[#allocation5 + $0x258] sm:$0xff]
    %v170 = vld [vmem:[#allocation5 + $0x260] sm:$0xff]
    %v171 = vld [vmem:[#allocation5 + $0x268] sm:$0xff]
    %v172 = vld [vmem:[#allocation5 + $0x270] sm:$0xff]
    %v173 = vld [vmem:[#allocation5 + $0x278] sm:$0xff]
    %v174 = vld [vmem:[#allocation5 + $0x280] sm:$0xff]
    %v175 = vld [vmem:[#allocation5 + $0x288] sm:$0xff]
    %v176 = vld [vmem:[#allocation5 + $0x290] sm:$0xff]
    %v177 = vld [vmem:[#allocation5 + $0x298] sm:$0xff]
    %v178 = vld [vmem:[#allocation5 + $0x2a0] sm:$0xff]
    %v179 = vld [vmem:[#allocation5 + $0x2a8] sm:$0xff]
    %v180 = vld [vmem:[#allocation5 + $0x2b0] sm:$0xff]
    %v181 = vld [vmem:[#allocation5 + $0x2b8] sm:$0xff]
    %v182 = vld [vmem:[#allocation5 + $0x2c0] sm:$0xff]
    %v183 = vld [vmem:[#allocation5 + $0x2c8] sm:$0xff]
    %v184 = vld [vmem:[#allocation5 + $0x2d0] sm:$0xff]
    %v185 = vld [vmem:[#allocation5 + $0x2d8] sm:$0xff]
    %v186 = vld [vmem:[#allocation5 + $0x2e0] sm:$0xff]
    %v187 = vld [vmem:[#allocation5 + $0x2e8] sm:$0xff]
    %v188 = vld [vmem:[#allocation5 + $0x2f0] sm:$0xff]
    %v189 = vld [vmem:[#allocation5 + $0x2f8] sm:$0xff]
    %190 = vmatprep.subr.mxu0 %v95
    %191 = vmatpush1.msra.mxu0 %v94
    %192 = vmatprep.subr.mxu0 %v101
    %193 = vmatpush1.msra.mxu0 %v100
    %194 = vmatprep.subr.mxu0 %v107
    %195 = vmatpush1.msra.mxu0 %v106
    %196 = vmatprep.subr.mxu0 %v113
    %197 = vmatpush1.msra.mxu0 %v112
    %198 = vmatprep.subr.mxu0 %v119
    %199 = vmatpush1.msra.mxu0 %v118
    %200 = vmatprep.subr.mxu0 %v125
    %201 = vmatpush1.msra.mxu0 %v124
    %202 = vmatprep.subr.mxu0 %v131
    %203 = vmatpush1.msra.mxu0 %v130
    %204 = vmatprep.subr.mxu0 %v137
    %205 = vmatpush1.msra.mxu0 %v136
    %206 = vmatprep.subr.mxu0 %v143
    %207 = vmatpush1.msra.mxu0 %v142
    %208 = vmatprep.subr.mxu0 %v149
    %209 = vmatpush1.msra.mxu0 %v148
    %210 = vmatprep.subr.mxu0 %v155
    %211 = vmatpush1.msra.mxu0 %v154
    %212 = vmatprep.subr.mxu0 %v161
    %213 = vmatpush1.msra.mxu0 %v160
    %214 = vmatprep.subr.mxu0 %v167
    %215 = vmatpush1.msra.mxu0 %v166
    %216 = vmatprep.subr.mxu0 %v173
    %217 = vmatpush1.msra.mxu0 %v172
    %218 = vmatprep.subr.mxu0 %v179
    %219 = vmatpush1.msra.mxu0 %v178
    %220 = vmatprep.subr.mxu0 %v185
    %221 = vmatpush1.msra.mxu0 %v184
    %222 = vmatprep.subr.mxu0 0.0
    %223 = vmatpush1.msra.mxu0 0.0
    %224 = vmatprep.subr.mxu0 0.0
    %225 = vmatpush1.msra.mxu0 0.0
    %226 = vmatprep.subr.mxu0 0.0
    %227 = vmatpush1.msra.mxu0 0.0
    %228 = vmatprep.subr.mxu0 0.0
    %229 = vmatpush1.msra.mxu0 0.0
    %230 = vmatprep.subr.mxu0 0.0
    %231 = vmatpush1.msra.mxu0 0.0
    %232 = vmatprep.subr.mxu0 0.0
    %233 = vmatpush1.msra.mxu0 0.0
    %234 = vmatprep.subr.mxu0 0.0
    %235 = vmatpush1.msra.mxu0 0.0
    %236 = vmatprep.subr.mxu0 0.0
    %237 = vmatpush1.msra.mxu0 0.0
    %238 = vmatprep.subr.mxu0 0.0
    %239 = vmatpush1.msra.mxu0 0.0
    %240 = vmatprep.subr.mxu0 0.0
    %241 = vmatpush1.msra.mxu0 0.0
    %242 = vmatprep.subr.mxu0 0.0
    %243 = vmatpush1.msra.mxu0 0.0
    %244 = vmatprep.subr.mxu0 0.0
    %245 = vmatpush1.msra.mxu0 0.0
    %246 = vmatprep.subr.mxu0 0.0
    %247 = vmatpush1.msra.mxu0 0.0
    %248 = vmatprep.subr.mxu0 0.0
    %249 = vmatpush1.msra.mxu0 0.0
    %250 = vmatprep.subr.mxu0 0.0
    %251 = vmatpush1.msra.mxu0 0.0
    %252 = vmatprep.subr.mxu0 0.0
    %253 = vmatpush1.msra.mxu0 0.0
    %254 = vmatprep.mubr.f32.mxu0 0.0
    %255 = vmatmul.mubr.f32.gmra.mrb[0].mxu0 %v92
    %v256 = vpop.f32.mrb[0].mxu0
    %v257 = vadd.f32 0.0, %v256
    %v258 = vpop.f32.mrb[0].mxu0
    %v259 = vadd.f32 0.0, %v258
    %260 = vmatprep.mubr.f32.mxu0 0.0
    %261 = vmatmul.mubr.f32.gmra.mrb[0].mxu0 %v93
    %v262 = vpop.f32.mrb[0].mxu0
    %v263 = vadd.f32 0.0, %v262
    %v264 = vpop.f32.mrb[0].mxu0
    %v265 = vadd.f32 0.0, %v264
    %266 = vdwg.mxu0
    %267 = vmatprep.subr.mxu0 %v97
    %268 = vmatpush1.msra.mxu0 %v96
    %269 = vmatprep.subr.mxu0 %v103
    %270 = vmatpush1.msra.mxu0 %v102
    %271 = vmatprep.subr.mxu0 %v109
    %272 = vmatpush1.msra.mxu0 %v108
    %273 = vmatprep.subr.mxu0 %v115
    %274 = vmatpush1.msra.mxu0 %v114
    %275 = vmatprep.subr.mxu0 %v121
    %276 = vmatpush1.msra.mxu0 %v120
    %277 = vmatprep.subr.mxu0 %v127
    %278 = vmatpush1.msra.mxu0 %v126
    %279 = vmatprep.subr.mxu0 %v133
    %280 = vmatpush1.msra.mxu0 %v132
    %281 = vmatprep.subr.mxu0 %v139
    %282 = vmatpush1.msra.mxu0 %v138
    %283 = vmatprep.subr.mxu0 %v145
    %284 = vmatpush1.msra.mxu0 %v144
    %285 = vmatprep.subr.mxu0 %v151
    %286 = vmatpush1.msra.mxu0 %v150
    %287 = vmatprep.subr.mxu0 %v157
    %288 = vmatpush1.msra.mxu0 %v156
    %289 = vmatprep.subr.mxu0 %v163
    %290 = vmatpush1.msra.mxu0 %v162
    %291 = vmatprep.subr.mxu0 %v169
    %292 = vmatpush1.msra.mxu0 %v168
    %293 = vmatprep.subr.mxu0 %v175
    %294 = vmatpush1.msra.mxu0 %v174
    %295 = vmatprep.subr.mxu0 %v181
    %296 = vmatpush1.msra.mxu0 %v180
    %297 = vmatprep.subr.mxu0 %v187
    %298 = vmatpush1.msra.mxu0 %v186
    %299 = vmatprep.subr.mxu0 0.0
    %300 = vmatpush1.msra.mxu0 0.0
    %301 = vmatprep.subr.mxu0 0.0
    %302 = vmatpush1.msra.mxu0 0.0
    %303 = vmatprep.subr.mxu0 0.0
    %304 = vmatpush1.msra.mxu0 0.0
    %305 = vmatprep.subr.mxu0 0.0
    %306 = vmatpush1.msra.mxu0 0.0
    %307 = vmatprep.subr.mxu0 0.0
    %308 = vmatpush1.msra.mxu0 0.0
    %309 = vmatprep.subr.mxu0 0.0
    %310 = vmatpush1.msra.mxu0 0.0
    %311 = vmatprep.subr.mxu0 0.0
    %312 = vmatpush1.msra.mxu0 0.0
    %313 = vmatprep.subr.mxu0 0.0
    %314 = vmatpush1.msra.mxu0 0.0
    %315 = vmatprep.subr.mxu0 0.0
    %316 = vmatpush1.msra.mxu0 0.0
    %317 = vmatprep.subr.mxu0 0.0
    %318 = vmatpush1.msra.mxu0 0.0
    %319 = vmatprep.subr.mxu0 0.0
    %320 = vmatpush1.msra.mxu0 0.0
    %321 = vmatprep.subr.mxu0 0.0
    %322 = vmatpush1.msra.mxu0 0.0
    %323 = vmatprep.subr.mxu0 0.0
    %324 = vmatpush1.msra.mxu0 0.0
    %325 = vmatprep.subr.mxu0 0.0
    %326 = vmatpush1.msra.mxu0 0.0
    %327 = vmatprep.subr.mxu0 0.0
    %328 = vmatpush1.msra.mxu0 0.0
    %329 = vmatprep.subr.mxu0 0.0
    %330 = vmatpush1.msra.mxu0 0.0
    %331 = vmatprep.mubr.f32.mxu0 0.0
    %332 = vmatmul.mubr.f32.gmra.mrb[0].mxu0 %v92
    %v333 = vpop.f32.mrb[0].mxu0
    %v334 = vadd.f32 0.0, %v333
    %v335 = vpop.f32.mrb[0].mxu0
    %v336 = vadd.f32 0.0, %v335
    %337 = vmatprep.mubr.f32.mxu0 0.0
    %338 = vmatmul.mubr.f32.gmra.mrb[0].mxu0 %v93
    %v339 = vpop.f32.mrb[0].mxu0
    %v340 = vadd.f32 0.0, %v339
    %v341 = vpop.f32.mrb[0].mxu0
    %v342 = vadd.f32 0.0, %v341
    %343 = vdwg.mxu0
    %344 = vmatprep.subr.mxu0 %v99
    %345 = vmatpush1.msra.mxu0 %v98
    %346 = vmatprep.subr.mxu0 %v105
    %347 = vmatpush1.msra.mxu0 %v104
    %348 = vmatprep.subr.mxu0 %v111
    %349 = vmatpush1.msra.mxu0 %v110
    %350 = vmatprep.subr.mxu0 %v117
    %351 = vmatpush1.msra.mxu0 %v116
    %352 = vmatprep.subr.mxu0 %v123
    %353 = vmatpush1.msra.mxu0 %v122
    %354 = vmatprep.subr.mxu0 %v129
    %355 = vmatpush1.msra.mxu0 %v128
    %356 = vmatprep.subr.mxu0 %v135
    %357 = vmatpush1.msra.mxu0 %v134
    %358 = vmatprep.subr.mxu0 %v141
    %359 = vmatpush1.msra.mxu0 %v140
    %360 = vmatprep.subr.mxu0 %v147
    %361 = vmatpush1.msra.mxu0 %v146
    %362 = vmatprep.subr.mxu0 %v153
    %363 = vmatpush1.msra.mxu0 %v152
    %364 = vmatprep.subr.mxu0 %v159
    %365 = vmatpush1.msra.mxu0 %v158
    %366 = vmatprep.subr.mxu0 %v165
    %367 = vmatpush1.msra.mxu0 %v164
    %368 = vmatprep.subr.mxu0 %v171
    %369 = vmatpush1.msra.mxu0 %v170
    %370 = vmatprep.subr.mxu0 %v177
    %371 = vmatpush1.msra.mxu0 %v176
    %372 = vmatprep.subr.mxu0 %v183
    %373 = vmatpush1.msra.mxu0 %v182
    %374 = vmatprep.subr.mxu0 %v189
    %375 = vmatpush1.msra.mxu0 %v188
    %376 = vmatprep.subr.mxu0 0.0
    %377 = vmatpush1.msra.mxu0 0.0
    %378 = vmatprep.subr.mxu0 0.0
    %379 = vmatpush1.msra.mxu0 0.0
    %380 = vmatprep.subr.mxu0 0.0
    %381 = vmatpush1.msra.mxu0 0.0
    %382 = vmatprep.subr.mxu0 0.0
    %383 = vmatpush1.msra.mxu0 0.0
    %384 = vmatprep.subr.mxu0 0.0
    %385 = vmatpush1.msra.mxu0 0.0
    %386 = vmatprep.subr.mxu0 0.0
    %387 = vmatpush1.msra.mxu0 0.0
    %388 = vmatprep.subr.mxu0 0.0
    %389 = vmatpush1.msra.mxu0 0.0
    %390 = vmatprep.subr.mxu0 0.0
    %391 = vmatpush1.msra.mxu0 0.0
    %392 = vmatprep.subr.mxu0 0.0
    %393 = vmatpush1.msra.mxu0 0.0
    %394 = vmatprep.subr.mxu0 0.0
    %395 = vmatpush1.msra.mxu0 0.0
    %396 = vmatprep.subr.mxu0 0.0
    %397 = vmatpush1.msra.mxu0 0.0
    %398 = vmatprep.subr.mxu0 0.0
    %399 = vmatpush1.msra.mxu0 0.0
    %400 = vmatprep.subr.mxu0 0.0
    %401 = vmatpush1.msra.mxu0 0.0
    %402 = vmatprep.subr.mxu0 0.0
    %403 = vmatpush1.msra.mxu0 0.0
    %404 = vmatprep.subr.mxu0 0.0
    %405 = vmatpush1.msra.mxu0 0.0
    %406 = vmatprep.subr.mxu0 0.0
    %407 = vmatpush1.msra.mxu0 0.0
    %408 = vmatprep.mubr.f32.mxu0 0.0
    %409 = vmatmul.mubr.f32.gmra.mrb[0].mxu0 %v92
    %v410 = vpop.f32.mrb[0].mxu0
    %v411 = vadd.f32 0.0, %v410
    %v412 = vpop.f32.mrb[0].mxu0
    %v413 = vadd.f32 0.0, %v412
    %414 = vmatprep.mubr.f32.mxu0 0.0
    %415 = vmatmul.mubr.f32.gmra.mrb[0].mxu0 %v93
    %v416 = vpop.f32.mrb[0].mxu0
    %v417 = vadd.f32 0.0, %v416
    %v418 = vpop.f32.mrb[0].mxu0
    %v419 = vadd.f32 0.0, %v418
    %420 = vdwg.mxu0
    %v421 = vld [vmem:[#allocation7] sm:$0xff]
    %v422 = vld [vmem:[#allocation7 + $0x8] sm:$0xff]
    %v423 = vld [vmem:[#allocation7 + $0x10] sm:$0xff]
    %v424 = vld [vmem:[#allocation7 + $0x18] sm:$0xff]
    %v425 = vld [vmem:[#allocation7 + $0x20] sm:$0xff]
    %v426 = vld [vmem:[#allocation7 + $0x28] sm:$0xff]
    %v427 = vld [vmem:[#allocation7 + $0x30] sm:$0xff]
    %v428 = vld [vmem:[#allocation7 + $0x38] sm:$0xff]
    %v429 = vmul.f32 %v259, %v421
    %v430 = vmul.f32 %v265, %v422
    %v431 = vmul.f32 %v259, %v423
    %v432 = vmul.f32 %v265, %v424
    %v433 = vmul.f32 %v259, %v425
    %v434 = vmul.f32 %v265, %v426
    %v435 = vmul.f32 %v259, %v427
    %v436 = vmul.f32 %v265, %v428
    %v437 = vld [vmem:[#allocation8] sm:$0xff]
    %v438 = vld [vmem:[#allocation8 + $0x8] sm:$0xff]
    %439 = vmatprep.subr.mxu0 0.0
    %440 = vmatpush1.xpose.msra.mxu0 %v429
    %441 = vmatprep.subr.mxu0 0.0
    %442 = vmatpush1.xpose.msra.mxu0 %v430
    %443 = vmatprep.subr.mxu0 0.0
    %444 = vmatpush1.xpose.msra.mxu0 %v431
    %445 = vmatprep.subr.mxu0 0.0
    %446 = vmatpush1.xpose.msra.mxu0 %v432
    %447 = vmatprep.subr.mxu0 0.0
    %448 = vmatpush1.xpose.msra.mxu0 %v433
    %449 = vmatprep.subr.mxu0 0.0
    %450 = vmatpush1.xpose.msra.mxu0 %v434
    %451 = vmatprep.subr.mxu0 0.0
    %452 = vmatpush1.xpose.msra.mxu0 %v435
    %453 = vmatprep.subr.mxu0 0.0
    %454 = vmatpush1.xpose.msra.mxu0 %v436
    %455 = vmatprep.subr.mxu0 0.0
    %456 = vmatpush1.xpose.msra.mxu0 0.0
    %457 = vmatprep.subr.mxu0 0.0
    %458 = vmatpush1.xpose.msra.mxu0 0.0
    %459 = vmatprep.subr.mxu0 0.0
    %460 = vmatpush1.xpose.msra.mxu0 0.0
    %461 = vmatprep.subr.mxu0 0.0
    %462 = vmatpush1.xpose.msra.mxu0 0.0
    %463 = vmatprep.subr.mxu0 0.0
    %464 = vmatpush1.xpose.msra.mxu0 0.0
    %465 = vmatprep.subr.mxu0 0.0
    %466 = vmatpush1.xpose.msra.mxu0 0.0
    %467 = vmatprep.subr.mxu0 0.0
    %468 = vmatpush1.xpose.msra.mxu0 0.0
    %469 = vmatprep.subr.mxu0 0.0
    %470 = vmatpush1.xpose.msra.mxu0 0.0
    %471 = vmatprep.subr.mxu0 0.0
    %472 = vmatpush1.xpose.msra.mxu0 0.0
    %473 = vmatprep.subr.mxu0 0.0
    %474 = vmatpush1.xpose.msra.mxu0 0.0
    %475 = vmatprep.subr.mxu0 0.0
    %476 = vmatpush1.xpose.msra.mxu0 0.0
    %477 = vmatprep.subr.mxu0 0.0
    %478 = vmatpush1.xpose.msra.mxu0 0.0
    %479 = vmatprep.subr.mxu0 0.0
    %480 = vmatpush1.xpose.msra.mxu0 0.0
    %481 = vmatprep.subr.mxu0 0.0
    %482 = vmatpush1.xpose.msra.mxu0 0.0
    %483 = vmatprep.subr.mxu0 0.0
    %484 = vmatpush1.xpose.msra.mxu0 0.0
    %485 = vmatprep.subr.mxu0 0.0
    %486 = vmatpush1.xpose.msra.mxu0 0.0
    %487 = vmatprep.subr.mxu0 0.0
    %488 = vmatpush1.xpose.msra.mxu0 0.0
    %489 = vmatprep.subr.mxu0 0.0
    %490 = vmatpush1.xpose.msra.mxu0 0.0
    %491 = vmatprep.subr.mxu0 0.0
    %492 = vmatpush1.xpose.msra.mxu0 0.0
    %493 = vmatprep.subr.mxu0 0.0
    %494 = vmatpush1.xpose.msra.mxu0 0.0
    %495 = vmatprep.subr.mxu0 0.0
    %496 = vmatpush1.xpose.msra.mxu0 0.0
    %497 = vmatprep.subr.mxu0 0.0
    %498 = vmatpush1.xpose.msra.mxu0 0.0
    %499 = vmatprep.subr.mxu0 0.0
    %500 = vmatpush1.xpose.msra.mxu0 0.0
    %501 = vmatprep.subr.mxu0 0.0
    %502 = vmatpush1.xpose.msra.mxu0 0.0
    %503 = vmatprep.mubr.f32.mxu0 0.0
    %504 = vmatmul.mubr.f32.gmra.mrb[0].mxu0 %v257
    %v505 = vpop.f32.mrb[0].mxu0
    %v506 = vadd.f32 %v437, %v505
    %v507 = vpop.f32.mrb[0].mxu0
    %508 = vmatprep.mubr.f32.mxu0 0.0
    %509 = vmatmul.mubr.f32.gmra.mrb[0].mxu0 %v263
    %v510 = vpop.f32.mrb[0].mxu0
    %v511 = vadd.f32 %v438, %v510
    %v512 = vpop.f32.mrb[0].mxu0
    %513 = vdwg.mxu0
    %vm514 = vcmask 523264
    %v515 = vsel %vm514, %v506, -inf
    %516 = vmax.xlane.f32.xlu0 %v515
    %v517 = vpop.xlane.xlu0 %516
    %v518 = vsel %vm514, %v511, -inf
    %519 = vmax.xlane.f32.xlu0 %v518
    %v520 = vpop.xlane.xlu0 %519
    %v521 = vsub.f32 %v506, %v517
    %v522 = vsub.f32 %v511, %v520
    %v523 = vmul.f32 %v521, 1.442695
    %v524 = vpow.pop %v523
    %v525 = vmul.f32 %v522, 1.442695
    %v526 = vpow.pop %v525
    %v527 = vld [vmem:[#allocation10] sm:$0xff]
    %v528 = vld [vmem:[#allocation10 + $0x8] sm:$0xff]
    %v529 = vld [vmem:[#allocation10 + $0x10] sm:$0xff]
    %v530 = vld [vmem:[#allocation10 + $0x18] sm:$0xff]
    %v531 = vld [vmem:[#allocation10 + $0x20] sm:$0xff]
    %v532 = vld [vmem:[#allocation10 + $0x28] sm:$0xff]
    %v533 = vld [vmem:[#allocation10 + $0x30] sm:$0xff]
    %v534 = vld [vmem:[#allocation10 + $0x38] sm:$0xff]
    %v536 = vsel %vm514, %v524, 0
    %v539 = vsel %vm514, %v526, 0
    %541 = vmatprep.subr.mxu0 0.0
    %542 = vmatpush1.msra.mxu0 %v527
    %543 = vmatprep.subr.mxu0 0.0
    %544 = vmatpush1.msra.mxu0 %v528
    %545 = vmatprep.subr.mxu0 0.0
    %546 = vmatpush1.msra.mxu0 %v529
    %547 = vmatprep.subr.mxu0 0.0
    %548 = vmatpush1.msra.mxu0 %v530
    %549 = vmatprep.subr.mxu0 0.0
    %550 = vmatpush1.msra.mxu0 %v531
    %551 = vmatprep.subr.mxu0 0.0
    %552 = vmatpush1.msra.mxu0 %v532
    %553 = vmatprep.subr.mxu0 0.0
    %554 = vmatpush1.msra.mxu0 %v533
    %555 = vmatprep.subr.mxu0 0.0
    %556 = vmatpush1.msra.mxu0 %v534
    %557 = vmatprep.subr.mxu0 0.0
    %558 = vmatpush1.msra.mxu0 0.0
    %559 = vmatprep.subr.mxu0 0.0
    %560 = vmatpush1.msra.mxu0 0.0
    %561 = vmatprep.subr.mxu0 0.0
    %562 = vmatpush1.msra.mxu0 0.0
    %563 = vmatprep.subr.mxu0 0.0
    %564 = vmatpush1.msra.mxu0 0.0
    %565 = vmatprep.subr.mxu0 0.0
    %566 = vmatpush1.msra.mxu0 0.0
    %567 = vmatprep.subr.mxu0 0.0
    %568 = vmatpush1.msra.mxu0 0.0
    %569 = vmatprep.subr.mxu0 0.0
    %570 = vmatpush1.msra.mxu0 0.0
    %571 = vmatprep.subr.mxu0 0.0
    %572 = vmatpush1.msra.mxu0 0.0
    %573 = vmatprep.subr.mxu0 0.0
    %574 = vmatpush1.msra.mxu0 0.0
    %575 = vmatprep.subr.mxu0 0.0
    %576 = vmatpush1.msra.mxu0 0.0
    %577 = vmatprep.subr.mxu0 0.0
    %578 = vmatpush1.msra.mxu0 0.0
    %579 = vmatprep.subr.mxu0 0.0
    %580 = vmatpush1.msra.mxu0 0.0
    %581 = vmatprep.subr.mxu0 0.0
    %582 = vmatpush1.msra.mxu0 0.0
    %583 = vmatprep.subr.mxu0 0.0
    %584 = vmatpush1.msra.mxu0 0.0
    %585 = vmatprep.subr.mxu0 0.0
    %586 = vmatpush1.msra.mxu0 0.0
    %587 = vmatprep.subr.mxu0 0.0
    %588 = vmatpush1.msra.mxu0 0.0
    %589 = vmatprep.subr.mxu0 0.0
    %590 = vmatpush1.msra.mxu0 0.0
    %591 = vmatprep.subr.mxu0 0.0
    %592 = vmatpush1.msra.mxu0 0.0
    %593 = vmatprep.subr.mxu0 0.0
    %594 = vmatpush1.msra.mxu0 0.0
    %595 = vmatprep.subr.mxu0 0.0
    %596 = vmatpush1.msra.mxu0 0.0
    %597 = vmatprep.subr.mxu0 0.0
    %598 = vmatpush1.msra.mxu0 0.0
    %599 = vmatprep.subr.mxu0 0.0
    %600 = vmatpush1.msra.mxu0 0.0
    %601 = vmatprep.subr.mxu0 0.0
    %602 = vmatpush1.msra.mxu0 0.0
    %603 = vmatprep.subr.mxu0 0.0
    %604 = vmatpush1.msra.mxu0 0.0
    %605 = vmatprep.mubr.f32.mxu0 0.0
    %606 = vmatmul.mubr.f32.gmra.mrb[0].mxu0 %v536
    %v607 = vpop.f32.mrb[0].mxu0
    %v608 = vadd.f32 0.0, %v607
    %v609 = vpop.f32.mrb[0].mxu0
    %610 = vmatprep.mubr.f32.mxu0 0.0
    %611 = vmatmul.mubr.f32.gmra.mrb[0].mxu0 %v539
    %v612 = vpop.f32.mrb[0].mxu0
    %v613 = vadd.f32 0.0, %v612
    %v614 = vpop.f32.mrb[0].mxu0
    %615 = vdwg.mxu0
    %v616 = vrcp.pop %v608
    %v617 = vmul.f32 %v524, %v616
    %v618 = vrcp.pop %v613
    %v619 = vmul.f32 %v526, %v618
    %v620 = vld [vmem:[%s5] sm:$0x1]
    %v622 = vlaneseq
    %v623 = vshrl.u32 %v622, 7
    %v624 = vsub.s32 0, %v623
    %v625 = vrot.slane %v620, %v624
    %v628 = vsel %vm514, %v617, 0
    %v631 = vsel %vm514, %v619, 0
    %633 = vmatprep.subr.mxu0 0.0
    %634 = vmatpush1.msra.mxu0 %v334
    %635 = vmatprep.subr.mxu0 0.0
    %636 = vmatpush1.msra.mxu0 %v340
    %637 = vmatprep.subr.mxu0 0.0
    %638 = vmatpush1.msra.mxu0 %v336
    %639 = vmatprep.subr.mxu0 0.0
    %640 = vmatpush1.msra.mxu0 %v342
    %641 = vmatprep.subr.mxu0 0.0
    %642 = vmatpush1.msra.mxu0 %v411
    %643 = vmatprep.subr.mxu0 0.0
    %644 = vmatpush1.msra.mxu0 %v417
    %645 = vmatprep.subr.mxu0 0.0
    %646 = vmatpush1.msra.mxu0 %v413
    %647 = vmatprep.subr.mxu0 0.0
    %648 = vmatpush1.msra.mxu0 %v419
    %649 = vmatprep.subr.mxu0 0.0
    %650 = vmatpush1.msra.mxu0 0.0
    %651 = vmatprep.subr.mxu0 0.0
    %652 = vmatpush1.msra.mxu0 0.0
    %653 = vmatprep.subr.mxu0 0.0
    %654 = vmatpush1.msra.mxu0 0.0
    %655 = vmatprep.subr.mxu0 0.0
    %656 = vmatpush1.msra.mxu0 0.0
    %657 = vmatprep.subr.mxu0 0.0
    %658 = vmatpush1.msra.mxu0 0.0
    %659 = vmatprep.subr.mxu0 0.0
    %660 = vmatpush1.msra.mxu0 0.0
    %661 = vmatprep.subr.mxu0 0.0
    %662 = vmatpush1.msra.mxu0 0.0
    %663 = vmatprep.subr.mxu0 0.0
    %664 = vmatpush1.msra.mxu0 0.0
    %665 = vmatprep.subr.mxu0 0.0
    %666 = vmatpush1.msra.mxu0 0.0
    %667 = vmatprep.subr.mxu0 0.0
    %668 = vmatpush1.msra.mxu0 0.0
    %669 = vmatprep.subr.mxu0 0.0
    %670 = vmatpush1.msra.mxu0 0.0
    %671 = vmatprep.subr.mxu0 0.0
    %672 = vmatpush1.msra.mxu0 0.0
    %673 = vmatprep.subr.mxu0 0.0
    %674 = vmatpush1.msra.mxu0 0.0
    %675 = vmatprep.subr.mxu0 0.0
    %676 = vmatpush1.msra.mxu0 0.0
    %677 = vmatprep.subr.mxu0 0.0
    %678 = vmatpush1.msra.mxu0 0.0
    %679 = vmatprep.subr.mxu0 0.0
    %680 = vmatpush1.msra.mxu0 0.0
    %681 = vmatprep.subr.mxu0 0.0
    %682 = vmatpush1.msra.mxu0 0.0
    %683 = vmatprep.subr.mxu0 0.0
    %684 = vmatpush1.msra.mxu0 0.0
    %685 = vmatprep.subr.mxu0 0.0
    %686 = vmatpush1.msra.mxu0 0.0
    %687 = vmatprep.subr.mxu0 0.0
    %688 = vmatpush1.msra.mxu0 0.0
    %689 = vmatprep.subr.mxu0 0.0
    %690 = vmatpush1.msra.mxu0 0.0
    %691 = vmatprep.subr.mxu0 0.0
    %692 = vmatpush1.msra.mxu0 0.0
    %693 = vmatprep.subr.mxu0 0.0
    %694 = vmatpush1.msra.mxu0 0.0
    %695 = vmatprep.subr.mxu0 0.0
    %696 = vmatpush1.msra.mxu0 0.0
    %697 = vmatprep.mubr.f32.mxu0 0.0
    %698 = vmatmul.mubr.f32.gmra.mrb[0].mxu0 %v628
    %v699 = vpop.f32.mrb[0].mxu0
    %v700 = vadd.f32 %v625, %v699
    %v701 = vpop.f32.mrb[0].mxu0
    %702 = vmatprep.mubr.f32.mxu0 0.0
    %703 = vmatmul.mubr.f32.gmra.mrb[0].mxu0 %v631
    %v704 = vpop.f32.mrb[0].mxu0
    %v705 = vadd.f32 %v625, %v704
    %v706 = vpop.f32.mrb[0].mxu0
    %707 = vdwg.mxu0
    %708 = vst [vmem:[#allocation11] sm:$0xff] %v700
    %709 = vst [vmem:[#allocation11 + $0x8] sm:$0xff] %v705
    // Predicated region
    $region46: #{mha_forward.1} parent=1 // pred_check
      _
    $region47: #{mha_forward.1} parent=1 // pred_check_branch
      %711 = sbr.rel (0) target = $region49
    $region48: #{mha_forward.1} parent=1 // pred_region
      %s713 = ssub.s32 256, 256
      %714 = vsyncadd [#allocation4], %s713
      %s715 = sshll.u32 [#allocation11], 4
      %s716 = int_to_ptr.vmem [resolvable:$true] %s715
      %721 = dma.vmem_to_hbm [thread:$0]  %s716, 256, %s6, [#allocation4], 128, 128, 8
    $region49: #{mha_forward.1} parent=1 // pred_fallthru
      _
    // Predicated region
    $region50: #{mha_forward.1} parent=1 // pred_check
      _
    $region51: #{mha_forward.1} parent=1 // pred_check_branch
      %723 = sbr.rel (0) target = $region53
    $region52: #{mha_forward.1} parent=1 // pred_region
      %724 = dma.done [#allocation4], 256
    $region53: #{mha_forward.1} parent=1 // pred_fallthru
      _
    %725 = vsyncpa [#allocation3], 1
    %726 = vsyncpa [#allocation6], 1
    %727 = vsyncpa [#allocation9], 1
    %728 = vsyncpa [#allocation4], 1

</llo_original>
